<compile_context>
chip_gen: v7x
topology: tpu7x:2x2x1
jax: 0.10.0
libtpu: 0.0.40
codegen_flags: <defaults>
</compile_context>

<pallas_src>
import jax
import jax.numpy as jnp
from jax.experimental import pallas as pl
from jax.experimental.pallas import tpu as pltpu

_NP = 128  # lane-dense padded width for the 2-class out_proj


def _round_up(x, m):
    return ((x + m - 1) // m) * m


def prepare_head_params(w_dense, b_dense, w_out, b_out, *, compute_dtype=jnp.bfloat16):
    """One-time parameter preparation (call at load time, NOT per forward).

    w_dense : [H, 2H]  PyTorch nn.Linear(2H, H).weight
    b_dense : [H]
    w_out   : [2, H]   PyTorch nn.Linear(H, 2).weight
    b_out   : [2]
    Returns (w1t [2H,H], b1 [1,H] f32, w2t [H,128], b2 [1,128] f32) in compute_dtype
    (weights) — transposed to plain (1,0) contraction layout and zero-padded lane-dense.
    """
    H, H2 = w_dense.shape
    assert H2 == 2 * H, "dense weight must be [H, 2H]"
    w1t = jnp.asarray(w_dense).T.astype(compute_dtype)                      # [2H, H]
    b1 = jnp.asarray(b_dense).reshape(1, H).astype(jnp.float32)             # [1, H]
    w2t = jnp.zeros((H, _NP), compute_dtype).at[:, :2].set(
        jnp.asarray(w_out).T.astype(compute_dtype))                         # [H, 128]
    b2 = jnp.zeros((1, _NP), jnp.float32).at[:, :2].set(
        jnp.asarray(b_out).astype(jnp.float32))                             # [1, 128]
    return w1t, b1, w2t, b2


def _head_kernel(x_ref, w1_ref, b1_ref, w2_ref, b2_ref, o_ref):
    # x_ref : [tm, 2H]   activation tile in its NATIVE dtype (cast in-kernel)
    # w1_ref: [2H, H]    pre-transposed dense weight (compute dtype)
    # b1_ref: [1, H]     dense bias (f32)
    # w2_ref: [H, 128]   pre-transposed, zero-padded out_proj weight (compute dtype)
    # b2_ref: [1, 128]   zero-padded out_proj bias (f32)
    # o_ref : [tm, 128]  padded logits (f32); wrapper slices [:, :2]
    x = x_ref[...].astype(w1_ref.dtype)                 # VPU cast, no HBM round trip
    h = jnp.dot(x, w1_ref[...],
                preferred_element_type=jnp.float32)     # [tm, H] f32 (MXU)
    h = jnp.tanh(h + b1_ref[...])                       # f32 bias add (VPU) + tanh (EUP)
    h = h.astype(w2_ref.dtype)
    out = jnp.dot(h, w2_ref[...],
                  preferred_element_type=jnp.float32)   # [tm, 128] f32, lane-dense
    o_ref[...] = (out + b2_ref[...]).astype(o_ref.dtype)


def _default_block_m(M):
    # Big tiles amortize the ~0.35 us per-grid-step overhead (v5e/v6e); on v7x cap the
    # tile so grid_m >= 2 and the "parallel" grid axis shards rows across both TCs.
    try:
        kind = jax.devices()[0].device_kind.lower()
    except Exception:
        kind = ""
    block_m = 512
    if "v7" in kind and M >= 16:
        block_m = min(block_m, max(8, _round_up(pl.cdiv(M, 2), 8)))
    return block_m


def codet5_classification_head(features, params, *, block_m=None):
    """CodeT5 RobertaClassificationHead forward.

    features: [B, H] pooled per-snippet hidden states (B even: pairs of snippets),
              any float dtype (kept native; cast happens in-kernel).
    params  : output of prepare_head_params(...)
    returns logits [B//2, 2] in float32.
    """
    w1t, b1, w2t, b2 = params
    H = w1t.shape[1]
    B, Hf = features.shape
    assert Hf == H, "feature width must equal hidden size"
    assert B % 2 == 0, "batch must be even (pairs of code snippets)"
    M = B // 2

    # [B, H] -> [M, 2H]: metadata-only reshape of a contiguous array (no HBM copy).
    x = features.reshape(M, 2 * H)

    if block_m is None:
        block_m = _default_block_m(M)
    tm = min(block_m, M)
    if tm < M:
        tm = _round_up(tm, 8)          # keep (8,128) tiling constraint for partial tiles
    grid_m = pl.cdiv(M, tm)

    bytes_accessed = (
        x.size * x.dtype.itemsize
        + w1t.size * w1t.dtype.itemsize
        + w2t.size * w2t.dtype.itemsize
        + b1.size * 4 + b2.size * 4
        + M * _NP * 4)
    cost = pl.CostEstimate(
        flops=2 * M * (2 * H) * H + 2 * M * H * _NP,
        transcendentals=M * H,
        bytes_accessed=bytes_accessed)

    out = pl.pallas_call(
        _head_kernel,
        out_shape=jax.ShapeDtypeStruct((M, _NP), jnp.float32),
        grid=(grid_m,),
        in_specs=[
            # Activation stream: blocked over M, double-buffered by the Pallas pipeline.
            pl.BlockSpec((tm, 2 * H), lambda i: (i, 0)),
            # Weights / biases: constant index_maps -> VMEM-resident across grid steps.
            pl.BlockSpec((2 * H, H), lambda i: (0, 0)),
            pl.BlockSpec((1, H), lambda i: (0, 0)),
            pl.BlockSpec((H, _NP), lambda i: (0, 0)),
            pl.BlockSpec((1, _NP), lambda i: (0, 0)),
        ],
        out_specs=pl.BlockSpec((tm, _NP), lambda i: (i, 0)),
        compiler_params=pltpu.CompilerParams(
            dimension_semantics=("parallel",)),
        cost_estimate=cost,
    )(x, w1t, b1, w2t, b2)

    return out[:, :2]


def _reference(features, w_dense, b_dense, w_out, b_out):
    B, H = features.shape
    x = features.reshape(B // 2, 2 * H)
    h = jnp.tanh(x @ w_dense.T + b_dense)
    return h @ w_out.T + b_out


if __name__ == "__main__":
    key = jax.random.PRNGKey(0)
    B, H = 8, 32  # small shapes: hidden_size=32 -> dense is (2H -> H), out_proj (H -> 2)

    k_feat, k_w1, k_b1, k_w2, k_b2 = jax.random.split(key, 5)
    features = jax.random.normal(k_feat, (B, H), dtype=jnp.float32)

    # Deterministic synthetic parameters (PyTorch shapes: dense [H, 2H], out_proj [2, H]).
    w_dense = jax.random.normal(k_w1, (H, 2 * H), dtype=jnp.float32) * 0.02
    b_dense = jax.random.normal(k_b1, (H,), dtype=jnp.float32) * 0.02
    w_out = jax.random.normal(k_w2, (2, H), dtype=jnp.float32) * 0.02
    b_out = jax.random.normal(k_b2, (2,), dtype=jnp.float32) * 0.02

    ref = _reference(features, w_dense, b_dense, w_out, b_out)

    # Exact path (f32 weights) — must match the f32 reference tightly.
    params_f32 = prepare_head_params(w_dense, b_dense, w_out, b_out,
                                     compute_dtype=jnp.float32)
    logits_f32 = codet5_classification_head(features, params_f32)
    logits_f32 = jax.block_until_ready(logits_f32)
    assert logits_f32.shape == (B // 2, 2)
    assert jnp.allclose(logits_f32, ref, atol=1e-5, rtol=1e-5), (logits_f32, ref)

    # Fast path (bf16 weights + in-kernel bf16 activation cast, f32 MXU accumulation).
    params_bf16 = prepare_head_params(w_dense, b_dense, w_out, b_out)
    logits_bf16 = codet5_classification_head(features, params_bf16)
    logits_bf16 = jax.block_until_ready(logits_bf16)
    assert logits_bf16.shape == (B // 2, 2)
    assert jnp.allclose(logits_bf16, ref, atol=5e-3, rtol=5e-2), (logits_bf16, ref)

    print("KERNEL_OK")
</pallas_src>

<mosaic_0001>
module attributes {stable_mosaic.version = 11 : i64} {
  func.func @_head_kernel(%arg0: i32, %arg1: memref<4x64xf32, #tpu.memory_space<vmem>>, %arg2: memref<64x32xf32, #tpu.memory_space<vmem>>, %arg3: memref<1x32xf32, #tpu.memory_space<vmem>>, %arg4: memref<32x128xf32, #tpu.memory_space<vmem>>, %arg5: memref<1x128xf32, #tpu.memory_space<vmem>>, %arg6: memref<4x128xf32, #tpu.memory_space<vmem>>) attributes {dimension_semantics = [#tpu.dimension_semantics<parallel>], iteration_bounds = array<i64: 1>, scalar_prefetch = 0 : i64, scratch_operands = 0 : i64, tpu.core_type = #tpu.core_type<tc>, window_params = [{transform_indices = @transform_0, window_bounds = array<i64: 4, 64>}, {pipeline_mode = #tpu.pipeline_mode<synchronous>, transform_indices = @transform_1, window_bounds = array<i64: 64, 32>}, {pipeline_mode = #tpu.pipeline_mode<synchronous>, transform_indices = @transform_2, window_bounds = array<i64: 1, 32>}, {pipeline_mode = #tpu.pipeline_mode<synchronous>, transform_indices = @transform_3, window_bounds = array<i64: 32, 128>}, {pipeline_mode = #tpu.pipeline_mode<synchronous>, transform_indices = @transform_4, window_bounds = array<i64: 1, 128>}, {transform_indices = @transform_5, window_bounds = array<i64: 4, 128>}]} {
    %c0 = arith.constant 0 : index
    %c0_0 = arith.constant 0 : index
    %0 = vector.load %arg1[%c0, %c0_0] : memref<4x64xf32, #tpu.memory_space<vmem>>, vector<4x64xf32>
    %c0_1 = arith.constant 0 : index
    %c0_2 = arith.constant 0 : index
    %1 = vector.load %arg2[%c0_1, %c0_2] : memref<64x32xf32, #tpu.memory_space<vmem>>, vector<64x32xf32>
    %cst = arith.constant dense<0.000000e+00> : vector<4x32xf32>
    %2 = tpu.matmul %0, %1, %cst {dimension_numbers = #tpu.dot_dimension_numbers<[1], [0], [0], [1], [0, 0, 1, 1], [], []>} : vector<4x64xf32>, vector<64x32xf32>, vector<4x32xf32> -> vector<4x32xf32>
    %c0_3 = arith.constant 0 : index
    %c0_4 = arith.constant 0 : index
    %3 = vector.load %arg3[%c0_3, %c0_4] : memref<1x32xf32, #tpu.memory_space<vmem>>, vector<1x32xf32>
    %4 = vector.broadcast %3 : vector<1x32xf32> to vector<4x32xf32>
    %5 = arith.addf %2, %4 : vector<4x32xf32>
    %6 = math.tanh %5 : vector<4x32xf32>
    %c0_5 = arith.constant 0 : index
    %c0_6 = arith.constant 0 : index
    %7 = vector.load %arg4[%c0_5, %c0_6] : memref<32x128xf32, #tpu.memory_space<vmem>>, vector<32x128xf32>
    %cst_7 = arith.constant dense<0.000000e+00> : vector<4x128xf32>
    %8 = tpu.matmul %6, %7, %cst_7 {dimension_numbers = #tpu.dot_dimension_numbers<[1], [0], [0], [1], [0, 0, 1, 1], [], []>} : vector<4x32xf32>, vector<32x128xf32>, vector<4x128xf32> -> vector<4x128xf32>
    %c0_8 = arith.constant 0 : index
    %c0_9 = arith.constant 0 : index
    %9 = vector.load %arg5[%c0_8, %c0_9] : memref<1x128xf32, #tpu.memory_space<vmem>>, vector<1x128xf32>
    %10 = vector.broadcast %9 : vector<1x128xf32> to vector<4x128xf32>
    %11 = arith.addf %8, %10 : vector<4x128xf32>
    %c0_10 = arith.constant 0 : index
    %c0_11 = arith.constant 0 : index
    %12 = vector.load %arg6[%c0_10, %c0_11] : memref<4x128xf32, #tpu.memory_space<vmem>>, vector<4x128xf32>
    tpu.vector_store %arg6[%c0_10, %c0_11], %11 {strides = array<i32>} : memref<4x128xf32, #tpu.memory_space<vmem>>, vector<4x128xf32>,
    return
  }
  func.func @transform_0(%arg0: i32) -> (i32, i32) {
    %c0_i32 = arith.constant 0 : i32
    %c0_i32_0 = arith.constant 0 : i32
    return %arg0, %c0_i32 : i32, i32
  }
  func.func @transform_1(%arg0: i32) -> (i32, i32) {
    %c0_i32 = arith.constant 0 : i32
    %c0_i32_0 = arith.constant 0 : i32
    %c0_i32_1 = arith.constant 0 : i32
    return %c0_i32, %c0_i32_0 : i32, i32
  }
  func.func @transform_2(%arg0: i32) -> (i32, i32) {
    %c0_i32 = arith.constant 0 : i32
    %c0_i32_0 = arith.constant 0 : i32
    %c0_i32_1 = arith.constant 0 : i32
    return %c0_i32, %c0_i32_0 : i32, i32
  }
  func.func @transform_3(%arg0: i32) -> (i32, i32) {
    %c0_i32 = arith.constant 0 : i32
    %c0_i32_0 = arith.constant 0 : i32
    %c0_i32_1 = arith.constant 0 : i32
    return %c0_i32, %c0_i32_0 : i32, i32
  }
  func.func @transform_4(%arg0: i32) -> (i32, i32) {
    %c0_i32 = arith.constant 0 : i32
    %c0_i32_0 = arith.constant 0 : i32
    %c0_i32_1 = arith.constant 0 : i32
    return %c0_i32, %c0_i32_0 : i32, i32
  }
  func.func @transform_5(%arg0: i32) -> (i32, i32) {
    %c0_i32 = arith.constant 0 : i32
    %c0_i32_0 = arith.constant 0 : i32
    return %arg0, %c0_i32 : i32, i32
  }
}

</mosaic_0001>

<llo_original>
// kernel: tpu_custom_call.1
$region0: #{tpu_custom_call.1}
  #allocation0 [shape = 'u32[]', space=smem, size = 0x4, offset = 0x4, fixed_abs, tag = 'smem constant byte address 0x4 - core index']
  #allocation1 [shape = 'u32[144,128]{1,0:T(1,128)}', space=vmem, size = 0x12000, scoped, tag = 'internal scratch']
  %s0 = inlined_call_operand.vmem [shape: f32[4,64], index: 0, kind: input, shape index: {}]
  %s1 = inlined_call_operand.vmem [shape: f32[64,32], index: 1, kind: input, shape index: {}]
  %s2 = inlined_call_operand.vmem [shape: f32[1,32], index: 2, kind: input, shape index: {}]
  %s3 = inlined_call_operand.vmem [shape: f32[32,128], index: 3, kind: input, shape index: {}]
  %s4 = inlined_call_operand.vmem [shape: f32[1,128], index: 4, kind: input, shape index: {}]
  %s5 = inlined_call_operand.hbm [shape: f32[4,128], index: 5, kind: output, shape index: {}]
  %s6 = sld [smem:[#allocation0]]
  $region30: #{tpu_custom_call.1} parent=0
    _
  %s8 = ssub.s32 1, %s6
  %s9 = scalar_select 0, %s8, %s6
  $region1: #{tpu_custom_call.1} parent=0
    #allocation2 [shape = 'u8[2048]{0}', space=vmem, size = 0x800, scoped, tag = 'output window, operand 0, single buffered']
    #allocation3 [shape = 's32[1]{0}', space=sflag, size = 0x4, scoped, tag = 'scoped memory for tpu_custom_call.1']
    %10 = vsyncpa [#allocation3], 0
    // Predicated region
    $region2: #{tpu_custom_call.1} parent=1 // pred_check
      _
    $region3: #{tpu_custom_call.1} parent=1 // pred_check_branch
      %12 = sbr.rel (0) target = $region5
    $region4: #{tpu_custom_call.1} parent=1 // pred_region
      _
    $region5: #{tpu_custom_call.1} parent=1 // pred_fallthru
      _
    // Predicated region
    $region6: #{tpu_custom_call.1} parent=1 // pred_check
      _
    $region7: #{tpu_custom_call.1} parent=1 // pred_check_branch
      %14 = sbr.rel (0) target = $region9
    $region8: #{tpu_custom_call.1} parent=1 // pred_region
      _
    $region9: #{tpu_custom_call.1} parent=1 // pred_fallthru
      _
    // Predicated region
    $region10: #{tpu_custom_call.1} parent=1 // pred_check
      _
    $region11: #{tpu_custom_call.1} parent=1 // pred_check_branch
      %16 = sbr.rel (0) target = $region13
    $region12: #{tpu_custom_call.1} parent=1 // pred_region
      _
    $region13: #{tpu_custom_call.1} parent=1 // pred_fallthru
      _
    // Predicated region
    $region14: #{tpu_custom_call.1} parent=1 // pred_check
      _
    $region15: #{tpu_custom_call.1} parent=1 // pred_check_branch
      %18 = sbr.rel (0) target = $region17
    $region16: #{tpu_custom_call.1} parent=1 // pred_region
      _
    $region17: #{tpu_custom_call.1} parent=1 // pred_fallthru
      _
    // Predicated region
    $region18: #{tpu_custom_call.1} parent=1 // pred_check
      _
    $region19: #{tpu_custom_call.1} parent=1 // pred_check_branch
      %20 = sbr.rel (0) target = $region21
    $region20: #{tpu_custom_call.1} parent=1 // pred_region
      _
    $region21: #{tpu_custom_call.1} parent=1 // pred_fallthru
      _
    %v21 = vld [vmem:[%s0] sm:$0xf]
    %v22 = vld [vmem:[%s1] sm:$0xff]
    %v23 = vld [vmem:[%s1 + $0x8] sm:$0xff]
    %v24 = vld [vmem:[%s1 + $0x10] sm:$0xff]
    %v25 = vld [vmem:[%s1 + $0x18] sm:$0xff]
    %v26 = vld [vmem:[%s1 + $0x20] sm:$0xff]
    %v27 = vld [vmem:[%s1 + $0x28] sm:$0xff]
    %v28 = vld [vmem:[%s1 + $0x30] sm:$0xff]
    %v29 = vld [vmem:[%s1 + $0x38] sm:$0xff]
    %v30 = vld [vmem:[%s2] sm:$0x1]
    %v32 = vlaneseq
    %v33 = vshrl.u32 %v32, 7
    %v34 = vsub.s32 0, %v33
    %v35 = vrot.slane %v30, %v34
    %vm37 = vcmask 523264
    %v39 = vsel %vm37, %v21, 0
    %41 = vmatprep.subr.mxu0 0.0
    %42 = vmatpush1.msra.mxu0 %v22
    %43 = vmatprep.subr.mxu0 0.0
    %44 = vmatpush1.msra.mxu0 %v23
    %45 = vmatprep.subr.mxu0 0.0
    %46 = vmatpush1.msra.mxu0 %v24
    %47 = vmatprep.subr.mxu0 0.0
    %48 = vmatpush1.msra.mxu0 %v25
    %49 = vmatprep.subr.mxu0 0.0
    %50 = vmatpush1.msra.mxu0 %v26
    %51 = vmatprep.subr.mxu0 0.0
    %52 = vmatpush1.msra.mxu0 %v27
    %53 = vmatprep.subr.mxu0 0.0
    %54 = vmatpush1.msra.mxu0 %v28
    %55 = vmatprep.subr.mxu0 0.0
    %56 = vmatpush1.msra.mxu0 %v29
    %57 = vmatprep.subr.mxu0 0.0
    %58 = vmatpush1.msra.mxu0 0.0
    %59 = vmatprep.subr.mxu0 0.0
    %60 = vmatpush1.msra.mxu0 0.0
    %61 = vmatprep.subr.mxu0 0.0
    %62 = vmatpush1.msra.mxu0 0.0
    %63 = vmatprep.subr.mxu0 0.0
    %64 = vmatpush1.msra.mxu0 0.0
    %65 = vmatprep.subr.mxu0 0.0
    %66 = vmatpush1.msra.mxu0 0.0
    %67 = vmatprep.subr.mxu0 0.0
    %68 = vmatpush1.msra.mxu0 0.0
    %69 = vmatprep.subr.mxu0 0.0
    %70 = vmatpush1.msra.mxu0 0.0
    %71 = vmatprep.subr.mxu0 0.0
    %72 = vmatpush1.msra.mxu0 0.0
    %73 = vmatprep.subr.mxu0 0.0
    %74 = vmatpush1.msra.mxu0 0.0
    %75 = vmatprep.subr.mxu0 0.0
    %76 = vmatpush1.msra.mxu0 0.0
    %77 = vmatprep.subr.mxu0 0.0
    %78 = vmatpush1.msra.mxu0 0.0
    %79 = vmatprep.subr.mxu0 0.0
    %80 = vmatpush1.msra.mxu0 0.0
    %81 = vmatprep.subr.mxu0 0.0
    %82 = vmatpush1.msra.mxu0 0.0
    %83 = vmatprep.subr.mxu0 0.0
    %84 = vmatpush1.msra.mxu0 0.0
    %85 = vmatprep.subr.mxu0 0.0
    %86 = vmatpush1.msra.mxu0 0.0
    %87 = vmatprep.subr.mxu0 0.0
    %88 = vmatpush1.msra.mxu0 0.0
    %89 = vmatprep.subr.mxu0 0.0
    %90 = vmatpush1.msra.mxu0 0.0
    %91 = vmatprep.subr.mxu0 0.0
    %92 = vmatpush1.msra.mxu0 0.0
    %93 = vmatprep.subr.mxu0 0.0
    %94 = vmatpush1.msra.mxu0 0.0
    %95 = vmatprep.subr.mxu0 0.0
    %96 = vmatpush1.msra.mxu0 0.0
    %97 = vmatprep.subr.mxu0 0.0
    %98 = vmatpush1.msra.mxu0 0.0
    %99 = vmatprep.subr.mxu0 0.0
    %100 = vmatpush1.msra.mxu0 0.0
    %101 = vmatprep.subr.mxu0 0.0
    %102 = vmatpush1.msra.mxu0 0.0
    %103 = vmatprep.subr.mxu0 0.0
    %104 = vmatpush1.msra.mxu0 0.0
    %105 = vmatprep.mubr.f32.mxu0 0.0
    %106 = vmatmul.mubr.f32.gmra.mrb[0].mxu0 %v39
    %v107 = vpop.f32.mrb[0].mxu0
    %v108 = vadd.f32 %v35, %v107
    %v109 = vpop.f32.mrb[0].mxu0
    %110 = vdwg.mxu0
    %v111 = vtanh.pop %v108
    %v112 = vld [vmem:[%s3] sm:$0xff]
    %v113 = vld [vmem:[%s3 + $0x8] sm:$0xff]
    %v114 = vld [vmem:[%s3 + $0x10] sm:$0xff]
    %v115 = vld [vmem:[%s3 + $0x18] sm:$0xff]
    %v116 = vld [vmem:[%s4] sm:$0x1]
    %v118 = vlaneseq
    %v119 = vshrl.u32 %v118, 7
    %v120 = vsub.s32 0, %v119
    %v121 = vrot.slane %v116, %v120
    %vm123 = vcmask 261120
    %v125 = vsel %vm123, %v111, 0
    %127 = vmatprep.subr.mxu0 0.0
    %128 = vmatpush1.msra.mxu0 %v112
    %129 = vmatprep.subr.mxu0 0.0
    %130 = vmatpush1.msra.mxu0 %v113
    %131 = vmatprep.subr.mxu0 0.0
    %132 = vmatpush1.msra.mxu0 %v114
    %133 = vmatprep.subr.mxu0 0.0
    %134 = vmatpush1.msra.mxu0 %v115
    %135 = vmatprep.subr.mxu0 0.0
    %136 = vmatpush1.msra.mxu0 0.0
    %137 = vmatprep.subr.mxu0 0.0
    %138 = vmatpush1.msra.mxu0 0.0
    %139 = vmatprep.subr.mxu0 0.0
    %140 = vmatpush1.msra.mxu0 0.0
    %141 = vmatprep.subr.mxu0 0.0
    %142 = vmatpush1.msra.mxu0 0.0
    %143 = vmatprep.subr.mxu0 0.0
    %144 = vmatpush1.msra.mxu0 0.0
    %145 = vmatprep.subr.mxu0 0.0
    %146 = vmatpush1.msra.mxu0 0.0
    %147 = vmatprep.subr.mxu0 0.0
    %148 = vmatpush1.msra.mxu0 0.0
    %149 = vmatprep.subr.mxu0 0.0
    %150 = vmatpush1.msra.mxu0 0.0
    %151 = vmatprep.subr.mxu0 0.0
    %152 = vmatpush1.msra.mxu0 0.0
    %153 = vmatprep.subr.mxu0 0.0
    %154 = vmatpush1.msra.mxu0 0.0
    %155 = vmatprep.subr.mxu0 0.0
    %156 = vmatpush1.msra.mxu0 0.0
    %157 = vmatprep.subr.mxu0 0.0
    %158 = vmatpush1.msra.mxu0 0.0
    %159 = vmatprep.subr.mxu0 0.0
    %160 = vmatpush1.msra.mxu0 0.0
    %161 = vmatprep.subr.mxu0 0.0
    %162 = vmatpush1.msra.mxu0 0.0
    %163 = vmatprep.subr.mxu0 0.0
    %164 = vmatpush1.msra.mxu0 0.0
    %165 = vmatprep.subr.mxu0 0.0
    %166 = vmatpush1.msra.mxu0 0.0
    %167 = vmatprep.subr.mxu0 0.0
    %168 = vmatpush1.msra.mxu0 0.0
    %169 = vmatprep.subr.mxu0 0.0
    %170 = vmatpush1.msra.mxu0 0.0
    %171 = vmatprep.subr.mxu0 0.0
    %172 = vmatpush1.msra.mxu0 0.0
    %173 = vmatprep.subr.mxu0 0.0
    %174 = vmatpush1.msra.mxu0 0.0
    %175 = vmatprep.subr.mxu0 0.0
    %176 = vmatpush1.msra.mxu0 0.0
    %177 = vmatprep.subr.mxu0 0.0
    %178 = vmatpush1.msra.mxu0 0.0
    %179 = vmatprep.subr.mxu0 0.0
    %180 = vmatpush1.msra.mxu0 0.0
    %181 = vmatprep.subr.mxu0 0.0
    %182 = vmatpush1.msra.mxu0 0.0
    %183 = vmatprep.subr.mxu0 0.0
    %184 = vmatpush1.msra.mxu0 0.0
    %185 = vmatprep.subr.mxu0 0.0
    %186 = vmatpush1.msra.mxu0 0.0
    %187 = vmatprep.subr.mxu0 0.0
    %188 = vmatpush1.msra.mxu0 0.0
    %189 = vmatprep.subr.mxu0 0.0
    %190 = vmatpush1.msra.mxu0 0.0
    %191 = vmatprep.mubr.f32.mxu0 0.0
    %192 = vmatmul.mubr.f32.gmra.mrb[0].mxu0 %v125
    %v193 = vpop.f32.mrb[0].mxu0
    %v194 = vadd.f32 %v121, %v193
    %v195 = vpop.f32.mrb[0].mxu0
    %196 = vdwg.mxu0
    %197 = vst [vmem:[#allocation2] sm:$0xf] %v194
    // Predicated region
    $region22: #{tpu_custom_call.1} parent=1 // pred_check
      _
    $region23: #{tpu_custom_call.1} parent=1 // pred_check_branch
      %199 = sbr.rel (0) target = $region25
    $region24: #{tpu_custom_call.1} parent=1 // pred_region
      %s201 = ssub.s32 64, 64
      %202 = vsyncadd [#allocation3], %s201
      %s204 = sshll.u32 [#allocation2], 4
      %s205 = int_to_ptr.vmem [resolvable:$true] %s204
      %207 = dma.vmem_to_hbm [thread:$0]  %s205, 64, %s5, [#allocation3]
    $region25: #{tpu_custom_call.1} parent=1 // pred_fallthru
      _
    // Predicated region
    $region26: #{tpu_custom_call.1} parent=1 // pred_check
      _
    $region27: #{tpu_custom_call.1} parent=1 // pred_check_branch
      %209 = sbr.rel (0) target = $region29
    $region28: #{tpu_custom_call.1} parent=1 // pred_region
      %210 = dma.done [#allocation3], 64
    $region29: #{tpu_custom_call.1} parent=1 // pred_fallthru
      _
    %211 = vsyncpa [#allocation3], 1

</llo_original>
